<compile_context>
chip_gen: v6e
topology: v6e:2x2x1
jax: 0.10.0
libtpu: 0.0.40
codegen_flags: <defaults>
</compile_context>

<pallas_src>
import functools

import jax
import jax.numpy as jnp
from jax.experimental import pallas as pl
from jax.experimental.pallas import tpu as pltpu


# -----------------------------------------------------------------------------
# Pallas kernel: packed LayerNorm + fused projection (signs pre-folded on host)
# -----------------------------------------------------------------------------
def _pe_forward_kernel(x_ref, rhsa_ref, ssum_ref, bcs_ref, bcc_ref, b_ref,
                       out_ref, *, inv_two_r, eps, wout):
    # x_ref    : (TM, P*2R)   sign-folded encodings, P nodes packed per row (bf16)
    # rhsa_ref : (P*2R, wout+P) [ block-diag W' (gamma folded) | per-node ones ]
    # ssum_ref : (P*2R, P)    per-node segmented-sum matrix (0/1)
    # bcs_ref  : (P, wout)    per-node -> output-lane broadcast (0/1)
    # bcc_ref  : (P, wout)    per-node -> output-lane broadcast of colsum(W')
    # b_ref    : (1, wout)    fused bias (beta @ W + b), tiled per node slot (f32)
    # out_ref  : (TM, wout)   lane-dense output
    x = x_ref[...]                                   # streamed dtype (bf16)

    # Fused projection + per-node sum in ONE MXU pass (K = 2R*P, N = wout + P).
    z = jnp.dot(x, rhsa_ref[...], preferred_element_type=jnp.float32)
    proj_x = z[:, :wout]                             # (TM, wout) = x @ W_bd
    mean = z[:, wout:] * inv_two_r                   # (TM, P)

    # Per-node E[x^2]; elementwise math stays f32 on the VPU.
    x32 = x.astype(jnp.float32)
    xsq = (x32 * x32).astype(ssum_ref.dtype)
    exsq = jnp.dot(xsq, ssum_ref[...],
                   preferred_element_type=jnp.float32) * inv_two_r   # (TM, P)
    var = jnp.maximum(exsq - mean * mean, 0.0)       # guard cancellation
    invstd = jax.lax.rsqrt(var + eps)                # (TM, P), EUP

    # Per-node scalars applied to the projection OUTPUT (W' is block-diagonal):
    #   out_g = invstd_g * (x_g @ W'_g - mean_g * colsum(W'_g)) + b'_g
    # Broadcast P scalars -> P*R lanes with two tiny K=P dots (MXU, cheap).
    scale_b = jnp.dot(invstd.astype(bcs_ref.dtype), bcs_ref[...],
                      preferred_element_type=jnp.float32)             # (TM, wout)
    corr_b = jnp.dot((-invstd * mean).astype(bcc_ref.dtype), bcc_ref[...],
                     preferred_element_type=jnp.float32)              # (TM, wout)

    out = scale_b * proj_x + corr_b + b_ref[...]
    out_ref[...] = out.astype(out_ref.dtype)


def hypergraph_pe_forward(encodings, signs, gamma, beta, w_t, b, *,
                          eps=1e-5, block_rows=512, stream_dtype=jnp.bfloat16,
                          out_dtype=jnp.float32):
    """Forward pass: proj(LayerNorm(encodings * signs)).

    encodings: (N, 2R) f32, signs: (N, 1) +/-1, gamma/beta: (2R,),
    w_t: (2R, R) (PyTorch Linear weight transposed), b: (R,).
    Returns (N, R) in out_dtype.
    """
    n, two_r = encodings.shape
    r = w_t.shape[1]

    # ---- fold LayerNorm affine into the projection ---------------------------
    gamma = jnp.asarray(gamma, jnp.float32).reshape(two_r, 1)
    beta = jnp.asarray(beta, jnp.float32).reshape(1, two_r)
    w_t = jnp.asarray(w_t, jnp.float32)
    b = jnp.asarray(b, jnp.float32).reshape(1, r)
    w_fused = gamma * w_t                       # (2R, R)  = diag(gamma) @ W
    b_fused = beta @ w_t + b                    # (1, R)   = beta @ W + b

    # ---- pad output width to a divisor of 128 so the store is lane-dense -----
    if r <= 128:
        r_pad = max(1, pl.next_power_of_2(r))   # divisor of 128
        p = 128 // r_pad
    else:
        r_pad = ((r + 127) // 128) * 128
        p = 1
    if r_pad != r:
        w_fused = jnp.pad(w_fused, ((0, 0), (0, r_pad - r)))
        b_fused = jnp.pad(b_fused, ((0, 0), (0, r_pad - r)))
    win, wout = p * two_r, p * r_pad

    # ---- fold +/-1 signs on the host (exact), pad node count, pack -----------
    x = jnp.asarray(encodings, jnp.float32) * jnp.asarray(signs, jnp.float32).reshape(n, 1)
    n_pad = ((n + p - 1) // p) * p
    if n_pad != n:
        x = jnp.concatenate([x, jnp.zeros((n_pad - n, two_r), x.dtype)], axis=0)
    rows = n_pad // p
    x_packed = x.reshape(rows, win).astype(stream_dtype)   # contiguous reshape

    # ---- packed constants (bf16; 0/1 and fused-weight values) ----------------
    eye_p = jnp.eye(p, dtype=jnp.float32)
    ssum = jnp.kron(eye_p, jnp.ones((two_r, 1), jnp.float32))        # (win, p)
    w_bd = jnp.kron(eye_p, w_fused)                                  # (win, wout)
    rhs_a = jnp.concatenate([w_bd, ssum], axis=1).astype(stream_dtype)  # (win, wout+p)
    ssum_c = ssum.astype(stream_dtype)
    csum = jnp.sum(w_fused, axis=0, keepdims=True)                   # (1, r_pad)
    bc_scale = jnp.kron(eye_p, jnp.ones((1, r_pad), jnp.float32)).astype(stream_dtype)
    bc_corr = jnp.kron(eye_p, csum).astype(stream_dtype)             # (p, wout)
    b_tile = jnp.tile(b_fused, (1, p))                               # (1, wout) f32

    # ---- row tiling: keep >= multiple grid steps for pipelining / 2 TCs ------
    if rows <= block_rows:
        tm = rows
    else:
        tm = max(16, (block_rows // 16) * 16)
    grid = (pl.cdiv(rows, tm),)

    # ---- VMEM budget sized for v7x (64 MiB physical / 32 MiB scoped) ---------
    esize = jnp.dtype(stream_dtype).itemsize
    osize = jnp.dtype(out_dtype).itemsize
    tile_bytes = tm * (win * esize + wout * osize)
    const_bytes = (win * (wout + p) + win * p + 2 * p * wout) * esize + wout * 4
    vmem_limit = int(min(max(2 * (2 * tile_bytes + 2 * const_bytes), 16 * 2**20),
                         32 * 2**20))

    out_packed = pl.pallas_call(
        functools.partial(_pe_forward_kernel, inv_two_r=1.0 / two_r, eps=eps,
                          wout=wout),
        out_shape=jax.ShapeDtypeStruct((rows, wout), out_dtype),
        grid=grid,
        in_specs=[
            pl.BlockSpec((tm, win), lambda i: (i, 0)),        # packed encodings (streamed)
            pl.BlockSpec((win, wout + p), lambda i: (0, 0)),  # [W_bd | ones]    (resident)
            pl.BlockSpec((win, p), lambda i: (0, 0)),         # segmented sum    (resident)
            pl.BlockSpec((p, wout), lambda i: (0, 0)),        # invstd broadcast (resident)
            pl.BlockSpec((p, wout), lambda i: (0, 0)),        # mean*csum bcast  (resident)
            pl.BlockSpec((1, wout), lambda i: (0, 0)),        # fused bias       (resident)
        ],
        out_specs=pl.BlockSpec((tm, wout), lambda i: (i, 0)),
        compiler_params=pltpu.CompilerParams(
            dimension_semantics=("parallel",),   # shard node tiles across TCs (v7x)
            vmem_limit_bytes=vmem_limit,
        ),
    )(x_packed, rhs_a, ssum_c, bc_scale, bc_corr, b_tile)

    return out_packed.reshape(n_pad, r_pad)[:n, :r]


# -----------------------------------------------------------------------------
# Pure-JAX reference (same math as the PyTorch module) for a correctness check
# -----------------------------------------------------------------------------
def _reference_forward(encodings, signs, gamma, beta, w_t, b, eps=1e-5,
                       stream_dtype=jnp.bfloat16):
    x = encodings.astype(stream_dtype).astype(jnp.float32) * signs
    mean = jnp.mean(x, axis=-1, keepdims=True)
    var = jnp.mean(jnp.square(x - mean), axis=-1, keepdims=True)
    xhat = (x - mean) * jax.lax.rsqrt(var + eps)
    y = xhat * jnp.reshape(gamma, (1, -1)) + jnp.reshape(beta, (1, -1))
    return y @ w_t + jnp.reshape(b, (1, -1))


# -----------------------------------------------------------------------------
# Setup glue (mirrors __init__ / svd_decomposition) -- one-time cost, plain JAX
# TODO(synk): Laplacian + torch.svd setup (cached to disk in the PyTorch module)
#             has no Pallas equivalent; it stays in plain JAX (jnp.linalg.svd).
# -----------------------------------------------------------------------------
def compute_laplacian(H):
    """Dense version of compute_laplacian_matrix (reproduces the literal
    (deg^-1)/2 semantics of the reference code)."""
    n, e = H.shape
    adj = (H != 0).astype(jnp.float32)
    d_v = jnp.sum(adj, axis=1)
    d_e = jnp.sum(adj, axis=0)
    D_v_inv_sqrt = jnp.diag((1.0 / d_v) / 2.0)
    D_e_inv = jnp.diag(1.0 / d_e)
    W = jnp.eye(e, dtype=jnp.float32)
    L = jnp.eye(n, dtype=jnp.float32) - D_v_inv_sqrt @ (
        H @ W @ (D_e_inv @ (H.T @ D_v_inv_sqrt))
    )
    return L


def svd_decomposition(H, pe_dim):
    L = compute_laplacian(H)
    U, S, Vh = jnp.linalg.svd(L)
    V = Vh.T                                     # torch.svd returns V, not Vh
    r = pe_dim
    U, S, V = U[:, :r], S[:r], V[:, :r]
    S_sqrt = jnp.sqrt(S + 1e-8).reshape(1, r)
    return jnp.concatenate([U * S_sqrt, V * S_sqrt], axis=-1)   # (n, 2r)


if __name__ == "__main__":
    # Small deterministic problem: 250 nodes (not a multiple of the packing
    # factor, to exercise padding), 64 hyperedges, pe_dim = 8.
    n_nodes, n_edges, pe_dim = 250, 64, 8

    key = jax.random.PRNGKey(0)
    k_h, k_idx, k_w, k_b, k_g, k_be = jax.random.split(key, 6)

    # Deterministic dense incidence with guaranteed nonzero node/edge degrees.
    H = (jax.random.uniform(k_h, (n_nodes, n_edges)) > 0.5).astype(jnp.float32)
    H = jnp.maximum(H, jnp.eye(n_nodes, n_edges, dtype=jnp.float32))  # every edge used
    H = H.at[:, 0].set(1.0)                                           # every node used

    # Cached positional encodings (one-time setup in the PyTorch module).
    encodings = svd_decomposition(H, pe_dim).astype(jnp.float32)      # (250, 16)

    # Module parameters (non-trivial gamma/beta to exercise the affine fusion).
    two_r = 2 * pe_dim
    gamma = 1.0 + 0.1 * jax.random.normal(k_g, (two_r,), jnp.float32)
    beta = 0.1 * jax.random.normal(k_be, (two_r,), jnp.float32)
    bound = 1.0 / (two_r ** 0.5)
    w = jax.random.uniform(k_w, (pe_dim, two_r), jnp.float32, -bound, bound)
    b = jax.random.uniform(k_b, (pe_dim,), jnp.float32, -bound, bound)
    w_t = w.T                                                         # (2R, R)

    # Random +/-1 signs per node (torch.randint(0,2) -> signs[-1,1][idx]).
    idx = jax.random.randint(k_idx, (n_nodes,), 0, 2)
    signs = (2 * idx - 1).astype(jnp.float32).reshape(n_nodes, 1)

    # Small block_rows so the demo exercises a multi-step grid.
    out = hypergraph_pe_forward(encodings, signs, gamma, beta, w_t, b,
                                block_rows=8)
    out = jax.block_until_ready(out)
    assert out.shape == (n_nodes, pe_dim)
    assert bool(jnp.all(jnp.isfinite(out)))

    ref = _reference_forward(encodings, signs, gamma, beta, w_t, b)
    max_err = float(jnp.max(jnp.abs(out - ref)))
    assert max_err < 5e-2, f"kernel mismatch vs reference: max abs err {max_err}"

    print("KERNEL_OK")
</pallas_src>

<mosaic_0001>
module attributes {stable_mosaic.version = 11 : i64} {
  func.func @_pe_forward_kernel(%arg0: i32, %arg1: memref<16x256xbf16, #tpu.memory_space<vmem>>, %arg2: memref<256x144xbf16, #tpu.memory_space<vmem>>, %arg3: memref<256x16xbf16, #tpu.memory_space<vmem>>, %arg4: memref<16x128xbf16, #tpu.memory_space<vmem>>, %arg5: memref<16x128xbf16, #tpu.memory_space<vmem>>, %arg6: memref<1x128xf32, #tpu.memory_space<vmem>>, %arg7: memref<16x128xf32, #tpu.memory_space<vmem>>) attributes {dimension_semantics = [#tpu.dimension_semantics<parallel>], iteration_bounds = array<i64: 1>, scalar_prefetch = 0 : i64, scratch_operands = 0 : i64, tpu.core_type = #tpu.core_type<tc>, window_params = [{transform_indices = @transform_0, window_bounds = array<i64: 16, 256>}, {pipeline_mode = #tpu.pipeline_mode<synchronous>, transform_indices = @transform_1, window_bounds = array<i64: 256, 144>}, {pipeline_mode = #tpu.pipeline_mode<synchronous>, transform_indices = @transform_2, window_bounds = array<i64: 256, 16>}, {pipeline_mode = #tpu.pipeline_mode<synchronous>, transform_indices = @transform_3, window_bounds = array<i64: 16, 128>}, {pipeline_mode = #tpu.pipeline_mode<synchronous>, transform_indices = @transform_4, window_bounds = array<i64: 16, 128>}, {pipeline_mode = #tpu.pipeline_mode<synchronous>, transform_indices = @transform_5, window_bounds = array<i64: 1, 128>}, {transform_indices = @transform_6, window_bounds = array<i64: 16, 128>}]} {
    %c0 = arith.constant 0 : index
    %c0_0 = arith.constant 0 : index
    %0 = vector.load %arg1[%c0, %c0_0] : memref<16x256xbf16, #tpu.memory_space<vmem>>, vector<16x256xbf16>
    %c0_1 = arith.constant 0 : index
    %c0_2 = arith.constant 0 : index
    %1 = vector.load %arg2[%c0_1, %c0_2] : memref<256x144xbf16, #tpu.memory_space<vmem>>, vector<256x144xbf16>
    %cst = arith.constant dense<0.000000e+00> : vector<16x144xf32>
    %2 = tpu.matmul %0, %1, %cst {dimension_numbers = #tpu.dot_dimension_numbers<[1], [0], [0], [1], [0, 0, 1, 1], [], []>} : vector<16x256xbf16>, vector<256x144xbf16>, vector<16x144xf32> -> vector<16x144xf32>
    %3 = vector.extract_strided_slice %2 {offsets = [0, 0], sizes = [16, 128], strides = [1, 1]} : vector<16x144xf32> to vector<16x128xf32>
    %4 = vector.extract_strided_slice %2 {offsets = [0, 128], sizes = [16, 16], strides = [1, 1]} : vector<16x144xf32> to vector<16x16xf32>
    %cst_3 = arith.constant 6.250000e-02 : f32
    %5 = vector.broadcast %cst_3 : f32 to vector<16x16xf32>
    %6 = arith.mulf %4, %5 : vector<16x16xf32>
    %7 = arith.extf %0 : vector<16x256xbf16> to vector<16x256xf32>
    %8 = arith.mulf %7, %7 : vector<16x256xf32>
    %9 = arith.truncf %8 : vector<16x256xf32> to vector<16x256xbf16>
    %c0_4 = arith.constant 0 : index
    %c0_5 = arith.constant 0 : index
    %10 = vector.load %arg3[%c0_4, %c0_5] : memref<256x16xbf16, #tpu.memory_space<vmem>>, vector<256x16xbf16>
    %cst_6 = arith.constant dense<0.000000e+00> : vector<16x16xf32>
    %11 = tpu.matmul %9, %10, %cst_6 {dimension_numbers = #tpu.dot_dimension_numbers<[1], [0], [0], [1], [0, 0, 1, 1], [], []>} : vector<16x256xbf16>, vector<256x16xbf16>, vector<16x16xf32> -> vector<16x16xf32>
    %cst_7 = arith.constant 6.250000e-02 : f32
    %12 = vector.broadcast %cst_7 : f32 to vector<16x16xf32>
    %13 = arith.mulf %11, %12 : vector<16x16xf32>
    %14 = arith.mulf %6, %6 : vector<16x16xf32>
    %15 = arith.subf %13, %14 : vector<16x16xf32>
    %cst_8 = arith.constant 0.000000e+00 : f32
    %16 = vector.broadcast %cst_8 : f32 to vector<16x16xf32>
    %17 = arith.maximumf %15, %16 : vector<16x16xf32>
    %cst_9 = arith.constant 9.99999974E-6 : f32
    %18 = vector.broadcast %cst_9 : f32 to vector<16x16xf32>
    %19 = arith.addf %17, %18 : vector<16x16xf32>
    %20 = math.rsqrt %19 : vector<16x16xf32>
    %21 = arith.truncf %20 : vector<16x16xf32> to vector<16x16xbf16>
    %c0_10 = arith.constant 0 : index
    %c0_11 = arith.constant 0 : index
    %22 = vector.load %arg4[%c0_10, %c0_11] : memref<16x128xbf16, #tpu.memory_space<vmem>>, vector<16x128xbf16>
    %cst_12 = arith.constant dense<0.000000e+00> : vector<16x128xf32>
    %23 = tpu.matmul %21, %22, %cst_12 {dimension_numbers = #tpu.dot_dimension_numbers<[1], [0], [0], [1], [0, 0, 1, 1], [], []>} : vector<16x16xbf16>, vector<16x128xbf16>, vector<16x128xf32> -> vector<16x128xf32>
    %cst_13 = arith.constant 0.000000e+00 : f32
    %24 = vector.broadcast %cst_13 : f32 to vector<16x16xf32>
    %25 = arith.subf %24, %20 : vector<16x16xf32>
    %26 = arith.mulf %25, %6 : vector<16x16xf32>
    %27 = arith.truncf %26 : vector<16x16xf32> to vector<16x16xbf16>
    %c0_14 = arith.constant 0 : index
    %c0_15 = arith.constant 0 : index
    %28 = vector.load %arg5[%c0_14, %c0_15] : memref<16x128xbf16, #tpu.memory_space<vmem>>, vector<16x128xbf16>
    %cst_16 = arith.constant dense<0.000000e+00> : vector<16x128xf32>
    %29 = tpu.matmul %27, %28, %cst_16 {dimension_numbers = #tpu.dot_dimension_numbers<[1], [0], [0], [1], [0, 0, 1, 1], [], []>} : vector<16x16xbf16>, vector<16x128xbf16>, vector<16x128xf32> -> vector<16x128xf32>
    %30 = arith.mulf %23, %3 : vector<16x128xf32>
    %31 = arith.addf %30, %29 : vector<16x128xf32>
    %c0_17 = arith.constant 0 : index
    %c0_18 = arith.constant 0 : index
    %32 = vector.load %arg6[%c0_17, %c0_18] : memref<1x128xf32, #tpu.memory_space<vmem>>, vector<1x128xf32>
    %33 = vector.broadcast %32 : vector<1x128xf32> to vector<16x128xf32>
    %34 = arith.addf %31, %33 : vector<16x128xf32>
    %c0_19 = arith.constant 0 : index
    %c0_20 = arith.constant 0 : index
    %35 = vector.load %arg7[%c0_19, %c0_20] : memref<16x128xf32, #tpu.memory_space<vmem>>, vector<16x128xf32>
    tpu.vector_store %arg7[%c0_19, %c0_20], %34 {strides = array<i32>} : memref<16x128xf32, #tpu.memory_space<vmem>>, vector<16x128xf32>,
    return
  }
  func.func @transform_0(%arg0: i32) -> (i32, i32) {
    %c0_i32 = arith.constant 0 : i32
    %c0_i32_0 = arith.constant 0 : i32
    return %arg0, %c0_i32 : i32, i32
  }
  func.func @transform_1(%arg0: i32) -> (i32, i32) {
    %c0_i32 = arith.constant 0 : i32
    %c0_i32_0 = arith.constant 0 : i32
    %c0_i32_1 = arith.constant 0 : i32
    return %c0_i32, %c0_i32_0 : i32, i32
  }
  func.func @transform_2(%arg0: i32) -> (i32, i32) {
    %c0_i32 = arith.constant 0 : i32
    %c0_i32_0 = arith.constant 0 : i32
    %c0_i32_1 = arith.constant 0 : i32
    return %c0_i32, %c0_i32_0 : i32, i32
  }
  func.func @transform_3(%arg0: i32) -> (i32, i32) {
    %c0_i32 = arith.constant 0 : i32
    %c0_i32_0 = arith.constant 0 : i32
    %c0_i32_1 = arith.constant 0 : i32
    return %c0_i32, %c0_i32_0 : i32, i32
  }
  func.func @transform_4(%arg0: i32) -> (i32, i32) {
    %c0_i32 = arith.constant 0 : i32
    %c0_i32_0 = arith.constant 0 : i32
    %c0_i32_1 = arith.constant 0 : i32
    return %c0_i32, %c0_i32_0 : i32, i32
  }
  func.func @transform_5(%arg0: i32) -> (i32, i32) {
    %c0_i32 = arith.constant 0 : i32
    %c0_i32_0 = arith.constant 0 : i32
    %c0_i32_1 = arith.constant 0 : i32
    return %c0_i32, %c0_i32_0 : i32, i32
  }
  func.func @transform_6(%arg0: i32) -> (i32, i32) {
    %c0_i32 = arith.constant 0 : i32
    %c0_i32_0 = arith.constant 0 : i32
    return %arg0, %c0_i32 : i32, i32
  }
}

</mosaic_0001>

<llo_original>
// kernel: tpu_custom_call.1
$region0: #{tpu_custom_call.1}
  #allocation0 [shape = 'u32[]', space=smem, size = 0x4, offset = 0x4, fixed_abs, tag = 'smem constant byte address 0x4 - core index']
  #allocation1 [shape = 'u32[144,128]{1,0:T(1,128)}', space=vmem, size = 0x12000, scoped, tag = 'internal scratch']
  %s0 = inlined_call_operand.vmem [shape: bf16[16,256], index: 0, kind: input, shape index: {}]
  %s1 = inlined_call_operand.vmem [shape: bf16[256,144], index: 1, kind: input, shape index: {}]
  %s2 = inlined_call_operand.vmem [shape: bf16[256,16], index: 2, kind: input, shape index: {}]
  %s3 = inlined_call_operand.vmem [shape: bf16[16,128], index: 3, kind: input, shape index: {}]
  %s4 = inlined_call_operand.vmem [shape: bf16[16,128], index: 4, kind: input, shape index: {}]
  %s5 = inlined_call_operand.vmem [shape: f32[1,128], index: 5, kind: input, shape index: {}]
  %s6 = inlined_call_operand.hbm [shape: f32[16,128], index: 6, kind: output, shape index: {}]
  %s7 = sld [smem:[#allocation0]]
  $region34: #{tpu_custom_call.1} parent=0
    _
  %s9 = ssub.s32 1, %s7
  %s10 = scalar_select 0, %s9, %s7
  $region1: #{tpu_custom_call.1} parent=0
    #allocation2 [shape = 'u8[8192]{0}', space=vmem, size = 0x2000, scoped, tag = 'output window, operand 0, single buffered']
    #allocation3 [shape = 's32[1]{0}', space=sflag, size = 0x4, scoped, tag = 'scoped memory for tpu_custom_call.1']
    %11 = vsyncpa [#allocation3], 0
    // Predicated region
    $region2: #{tpu_custom_call.1} parent=1 // pred_check
      _
    $region3: #{tpu_custom_call.1} parent=1 // pred_check_branch
      %13 = sbr.rel (0) target = $region5
    $region4: #{tpu_custom_call.1} parent=1 // pred_region
      _
    $region5: #{tpu_custom_call.1} parent=1 // pred_fallthru
      _
    // Predicated region
    $region6: #{tpu_custom_call.1} parent=1 // pred_check
      _
    $region7: #{tpu_custom_call.1} parent=1 // pred_check_branch
      %15 = sbr.rel (0) target = $region9
    $region8: #{tpu_custom_call.1} parent=1 // pred_region
      _
    $region9: #{tpu_custom_call.1} parent=1 // pred_fallthru
      _
    // Predicated region
    $region10: #{tpu_custom_call.1} parent=1 // pred_check
      _
    $region11: #{tpu_custom_call.1} parent=1 // pred_check_branch
      %17 = sbr.rel (0) target = $region13
    $region12: #{tpu_custom_call.1} parent=1 // pred_region
      _
    $region13: #{tpu_custom_call.1} parent=1 // pred_fallthru
      _
    // Predicated region
    $region14: #{tpu_custom_call.1} parent=1 // pred_check
      _
    $region15: #{tpu_custom_call.1} parent=1 // pred_check_branch
      %19 = sbr.rel (0) target = $region17
    $region16: #{tpu_custom_call.1} parent=1 // pred_region
      _
    $region17: #{tpu_custom_call.1} parent=1 // pred_fallthru
      _
    // Predicated region
    $region18: #{tpu_custom_call.1} parent=1 // pred_check
      _
    $region19: #{tpu_custom_call.1} parent=1 // pred_check_branch
      %21 = sbr.rel (0) target = $region21
    $region20: #{tpu_custom_call.1} parent=1 // pred_region
      _
    $region21: #{tpu_custom_call.1} parent=1 // pred_fallthru
      _
    // Predicated region
    $region22: #{tpu_custom_call.1} parent=1 // pred_check
      _
    $region23: #{tpu_custom_call.1} parent=1 // pred_check_branch
      %23 = sbr.rel (0) target = $region25
    $region24: #{tpu_custom_call.1} parent=1 // pred_region
      _
    $region25: #{tpu_custom_call.1} parent=1 // pred_fallthru
      _
    %v25 = vld [vmem:[%s0] sm:$0xff]
    %v26 = vld [vmem:[%s0 + $0x8] sm:$0xff]
    %v27 = vld [vmem:[%s1] sm:$0xff]
    %v28 = vld [vmem:[%s1 + $0x8] sm:$0xff]
    %v29 = vld [vmem:[%s1 + $0x10] sm:$0xff]
    %v30 = vld [vmem:[%s1 + $0x18] sm:$0xff]
    %v31 = vld [vmem:[%s1 + $0x20] sm:$0xff]
    %v32 = vld [vmem:[%s1 + $0x28] sm:$0xff]
    %v33 = vld [vmem:[%s1 + $0x30] sm:$0xff]
    %v34 = vld [vmem:[%s1 + $0x38] sm:$0xff]
    %v35 = vld [vmem:[%s1 + $0x40] sm:$0xff]
    %v36 = vld [vmem:[%s1 + $0x48] sm:$0xff]
    %v37 = vld [vmem:[%s1 + $0x50] sm:$0xff]
    %v38 = vld [vmem:[%s1 + $0x58] sm:$0xff]
    %v39 = vld [vmem:[%s1 + $0x60] sm:$0xff]
    %v40 = vld [vmem:[%s1 + $0x68] sm:$0xff]
    %v41 = vld [vmem:[%s1 + $0x70] sm:$0xff]
    %v42 = vld [vmem:[%s1 + $0x78] sm:$0xff]
    %v43 = vld [vmem:[%s1 + $0x80] sm:$0xff]
    %v44 = vld [vmem:[%s1 + $0x88] sm:$0xff]
    %v45 = vld [vmem:[%s1 + $0x90] sm:$0xff]
    %v46 = vld [vmem:[%s1 + $0x98] sm:$0xff]
    %v47 = vld [vmem:[%s1 + $0xa0] sm:$0xff]
    %v48 = vld [vmem:[%s1 + $0xa8] sm:$0xff]
    %v49 = vld [vmem:[%s1 + $0xb0] sm:$0xff]
    %v50 = vld [vmem:[%s1 + $0xb8] sm:$0xff]
    %v51 = vld [vmem:[%s1 + $0xc0] sm:$0xff]
    %v52 = vld [vmem:[%s1 + $0xc8] sm:$0xff]
    %v53 = vld [vmem:[%s1 + $0xd0] sm:$0xff]
    %v54 = vld [vmem:[%s1 + $0xd8] sm:$0xff]
    %v55 = vld [vmem:[%s1 + $0xe0] sm:$0xff]
    %v56 = vld [vmem:[%s1 + $0xe8] sm:$0xff]
    %v57 = vld [vmem:[%s1 + $0xf0] sm:$0xff]
    %v58 = vld [vmem:[%s1 + $0xf8] sm:$0xff]
    %v61 = vunpack.c.l.b16 %v25
    %v62 = vunpack.c.h.b16 %v25
    %v63 = vunpack.c.l.b16 %v26
    %v64 = vunpack.c.h.b16 %v26
    %v65 = vpack.c.b16 %v63, %v61
    %v66 = vpack.c.b16 %v64, %v62
    %v101 = vunpack.c.l.b16 %v27
    %v102 = vunpack.c.h.b16 %v27
    %v103 = vunpack.c.l.b16 %v28
    %v104 = vunpack.c.h.b16 %v28
    %v105 = vunpack.c.l.b16 %v29
    %v106 = vunpack.c.h.b16 %v29
    %v107 = vunpack.c.l.b16 %v30
    %v108 = vunpack.c.h.b16 %v30
    %v109 = vunpack.c.l.b16 %v31
    %v110 = vunpack.c.h.b16 %v31
    %v111 = vunpack.c.l.b16 %v32
    %v112 = vunpack.c.h.b16 %v32
    %v113 = vunpack.c.l.b16 %v33
    %v114 = vunpack.c.h.b16 %v33
    %v115 = vunpack.c.l.b16 %v34
    %v116 = vunpack.c.h.b16 %v34
    %v117 = vunpack.c.l.b16 %v35
    %v118 = vunpack.c.h.b16 %v35
    %v119 = vunpack.c.l.b16 %v36
    %v120 = vunpack.c.h.b16 %v36
    %v121 = vunpack.c.l.b16 %v37
    %v122 = vunpack.c.h.b16 %v37
    %v123 = vunpack.c.l.b16 %v38
    %v124 = vunpack.c.h.b16 %v38
    %v125 = vunpack.c.l.b16 %v39
    %v126 = vunpack.c.h.b16 %v39
    %v127 = vunpack.c.l.b16 %v40
    %v128 = vunpack.c.h.b16 %v40
    %v129 = vunpack.c.l.b16 %v41
    %v130 = vunpack.c.h.b16 %v41
    %v131 = vunpack.c.l.b16 %v42
    %v132 = vunpack.c.h.b16 %v42
    %v133 = vunpack.c.l.b16 %v43
    %v134 = vunpack.c.h.b16 %v43
    %v135 = vunpack.c.l.b16 %v44
    %v136 = vunpack.c.h.b16 %v44
    %v137 = vunpack.c.l.b16 %v45
    %v138 = vunpack.c.h.b16 %v45
    %v139 = vunpack.c.l.b16 %v46
    %v140 = vunpack.c.h.b16 %v46
    %v141 = vunpack.c.l.b16 %v47
    %v142 = vunpack.c.h.b16 %v47
    %v143 = vunpack.c.l.b16 %v48
    %v144 = vunpack.c.h.b16 %v48
    %v145 = vunpack.c.l.b16 %v49
    %v146 = vunpack.c.h.b16 %v49
    %v147 = vunpack.c.l.b16 %v50
    %v148 = vunpack.c.h.b16 %v50
    %v149 = vunpack.c.l.b16 %v51
    %v150 = vunpack.c.h.b16 %v51
    %v151 = vunpack.c.l.b16 %v52
    %v152 = vunpack.c.h.b16 %v52
    %v153 = vunpack.c.l.b16 %v53
    %v154 = vunpack.c.h.b16 %v53
    %v155 = vunpack.c.l.b16 %v54
    %v156 = vunpack.c.h.b16 %v54
    %v157 = vunpack.c.l.b16 %v55
    %v158 = vunpack.c.h.b16 %v55
    %v159 = vunpack.c.l.b16 %v56
    %v160 = vunpack.c.h.b16 %v56
    %v161 = vunpack.c.l.b16 %v57
    %v162 = vunpack.c.h.b16 %v57
    %v163 = vunpack.c.l.b16 %v58
    %v164 = vunpack.c.h.b16 %v58
    %v165 = vpack.c.b16 %v103, %v101
    %v166 = vpack.c.b16 %v104, %v102
    %v167 = vpack.c.b16 %v107, %v105
    %v168 = vpack.c.b16 %v108, %v106
    %v169 = vpack.c.b16 %v111, %v109
    %v170 = vpack.c.b16 %v112, %v110
    %v171 = vpack.c.b16 %v115, %v113
    %v172 = vpack.c.b16 %v116, %v114
    %v173 = vpack.c.b16 %v119, %v117
    %v174 = vpack.c.b16 %v120, %v118
    %v175 = vpack.c.b16 %v123, %v121
    %v176 = vpack.c.b16 %v124, %v122
    %v177 = vpack.c.b16 %v127, %v125
    %v178 = vpack.c.b16 %v128, %v126
    %v179 = vpack.c.b16 %v131, %v129
    %v180 = vpack.c.b16 %v132, %v130
    %v181 = vpack.c.b16 %v135, %v133
    %v182 = vpack.c.b16 %v136, %v134
    %v183 = vpack.c.b16 %v139, %v137
    %v184 = vpack.c.b16 %v140, %v138
    %v185 = vpack.c.b16 %v143, %v141
    %v186 = vpack.c.b16 %v144, %v142
    %v187 = vpack.c.b16 %v147, %v145
    %v188 = vpack.c.b16 %v148, %v146
    %v189 = vpack.c.b16 %v151, %v149
    %v190 = vpack.c.b16 %v152, %v150
    %v191 = vpack.c.b16 %v155, %v153
    %v192 = vpack.c.b16 %v156, %v154
    %v193 = vpack.c.b16 %v159, %v157
    %v194 = vpack.c.b16 %v160, %v158
    %v195 = vpack.c.b16 %v163, %v161
    %v196 = vpack.c.b16 %v164, %v162
    %229 = vmatprep.subr.bf16.mxu0 %v180
    %230 = vmatpush1.bf16.msra.mxu0 %v179
    %231 = vmatprep.subr.bf16.mxu0 %v178
    %232 = vmatpush1.bf16.msra.mxu0 %v177
    %233 = vmatprep.subr.bf16.mxu0 %v176
    %234 = vmatpush1.bf16.msra.mxu0 %v175
    %235 = vmatprep.subr.bf16.mxu0 %v174
    %236 = vmatpush1.bf16.msra.mxu0 %v173
    %237 = vmatprep.subr.bf16.mxu0 %v172
    %238 = vmatpush1.bf16.msra.mxu0 %v171
    %239 = vmatprep.subr.bf16.mxu0 %v170
    %240 = vmatpush1.bf16.msra.mxu0 %v169
    %241 = vmatprep.subr.bf16.mxu0 %v168
    %242 = vmatpush1.bf16.msra.mxu0 %v167
    %243 = vmatprep.subr.bf16.mxu0 %v166
    %244 = vmatpush1.bf16.msra.mxu0 %v165
    %245 = vmatprep.subr.bf16.mxu0 %v196
    %246 = vmatpush2.bf16.msra.mxu0 %v195
    %247 = vmatprep.subr.bf16.mxu0 %v194
    %248 = vmatpush2.bf16.msra.mxu0 %v193
    %249 = vmatprep.subr.bf16.mxu0 %v192
    %250 = vmatpush2.bf16.msra.mxu0 %v191
    %251 = vmatprep.subr.bf16.mxu0 %v190
    %252 = vmatpush2.bf16.msra.mxu0 %v189
    %253 = vmatprep.subr.bf16.mxu0 %v188
    %254 = vmatpush2.bf16.msra.mxu0 %v187
    %255 = vmatprep.subr.bf16.mxu0 %v186
    %256 = vmatpush2.bf16.msra.mxu0 %v185
    %257 = vmatprep.subr.bf16.mxu0 %v184
    %258 = vmatpush2.bf16.msra.mxu0 %v183
    %259 = vmatprep.subr.bf16.mxu0 %v182
    %260 = vmatpush2.bf16.msra.mxu0 %v181
    %261 = vmatprep.mubr.bf16.mxu0 %v66
    %262 = vmatmul.mubr.bf16.gmra.mxu0 %v65
    %v263 = vpop.f32.mrf.mxu0
    %v264 = vadd.f32 0.0, %v263
    %v265 = vpop.f32.mrf.mxu0
    %v266 = vadd.f32 0.0, %v265
    %v267 = vpop.f32.mrf.mxu0
    %v268 = vadd.f32 0.0, %v267
    %v269 = vpop.f32.mrf.mxu0
    %v270 = vadd.f32 0.0, %v269
    %271 = vdwg.mxu0
    %v272 = vmul.f32 %v266, 0.0625
    %v273 = vmul.f32 %v270, 0.0625
    %v274 = vunpack.c.l.bf16 %v25
    %v275 = vunpack.c.h.bf16 %v25
    %v276 = vunpack.c.l.bf16 %v26
    %v277 = vunpack.c.h.bf16 %v26
    %v278 = vmul.f32 %v274, %v274
    %v279 = vmul.f32 %v275, %v275
    %v280 = vmul.f32 %v276, %v276
    %v281 = vmul.f32 %v277, %v277
    %v282 = vpack.c.bf16 %v280, %v278
    %v283 = vpack.c.bf16 %v281, %v279
    %v284 = vld [vmem:[%s2] sm:$0xf]
    %v285 = vld [vmem:[%s2 + $0x4] sm:$0xf]
    %v286 = vld [vmem:[%s2 + $0x8] sm:$0xf]
    %v287 = vld [vmem:[%s2 + $0xc] sm:$0xf]
    %v288 = vld [vmem:[%s2 + $0x10] sm:$0xf]
    %v289 = vld [vmem:[%s2 + $0x14] sm:$0xf]
    %v290 = vld [vmem:[%s2 + $0x18] sm:$0xf]
    %v291 = vld [vmem:[%s2 + $0x1c] sm:$0xf]
    %v292 = vld [vmem:[%s2 + $0x20] sm:$0xf]
    %v293 = vld [vmem:[%s2 + $0x24] sm:$0xf]
    %v294 = vld [vmem:[%s2 + $0x28] sm:$0xf]
    %v295 = vld [vmem:[%s2 + $0x2c] sm:$0xf]
    %v296 = vld [vmem:[%s2 + $0x30] sm:$0xf]
    %v297 = vld [vmem:[%s2 + $0x34] sm:$0xf]
    %v298 = vld [vmem:[%s2 + $0x38] sm:$0xf]
    %v299 = vld [vmem:[%s2 + $0x3c] sm:$0xf]
    %v300 = vld [vmem:[%s2 + $0x40] sm:$0xf]
    %v301 = vld [vmem:[%s2 + $0x44] sm:$0xf]
    %v302 = vld [vmem:[%s2 + $0x48] sm:$0xf]
    %v303 = vld [vmem:[%s2 + $0x4c] sm:$0xf]
    %v304 = vld [vmem:[%s2 + $0x50] sm:$0xf]
    %v305 = vld [vmem:[%s2 + $0x54] sm:$0xf]
    %v306 = vld [vmem:[%s2 + $0x58] sm:$0xf]
    %v307 = vld [vmem:[%s2 + $0x5c] sm:$0xf]
    %v308 = vld [vmem:[%s2 + $0x60] sm:$0xf]
    %v309 = vld [vmem:[%s2 + $0x64] sm:$0xf]
    %v310 = vld [vmem:[%s2 + $0x68] sm:$0xf]
    %v311 = vld [vmem:[%s2 + $0x6c] sm:$0xf]
    %v312 = vld [vmem:[%s2 + $0x70] sm:$0xf]
    %v313 = vld [vmem:[%s2 + $0x74] sm:$0xf]
    %v314 = vld [vmem:[%s2 + $0x78] sm:$0xf]
    %v315 = vld [vmem:[%s2 + $0x7c] sm:$0xf]
    %v348 = vunpack.c.l.b16 %v284
    %v349 = vunpack.c.l.b16 %v285
    %v350 = vunpack.c.l.b16 %v286
    %v351 = vunpack.c.l.b16 %v287
    %v352 = vunpack.c.l.b16 %v288
    %v353 = vunpack.c.l.b16 %v289
    %v354 = vunpack.c.l.b16 %v290
    %v355 = vunpack.c.l.b16 %v291
    %v356 = vunpack.c.l.b16 %v292
    %v357 = vunpack.c.l.b16 %v293
    %v358 = vunpack.c.l.b16 %v294
    %v359 = vunpack.c.l.b16 %v295
    %v360 = vunpack.c.l.b16 %v296
    %v361 = vunpack.c.l.b16 %v297
    %v362 = vunpack.c.l.b16 %v298
    %v363 = vunpack.c.l.b16 %v299
    %v364 = vunpack.c.l.b16 %v300
    %v365 = vunpack.c.l.b16 %v301
    %v366 = vunpack.c.l.b16 %v302
    %v367 = vunpack.c.l.b16 %v303
    %v368 = vunpack.c.l.b16 %v304
    %v369 = vunpack.c.l.b16 %v305
    %v370 = vunpack.c.l.b16 %v306
    %v371 = vunpack.c.l.b16 %v307
    %v372 = vunpack.c.l.b16 %v308
    %v373 = vunpack.c.l.b16 %v309
    %v374 = vunpack.c.l.b16 %v310
    %v375 = vunpack.c.l.b16 %v311
    %v376 = vunpack.c.l.b16 %v312
    %v377 = vunpack.c.l.b16 %v313
    %v378 = vunpack.c.l.b16 %v314
    %v379 = vunpack.c.l.b16 %v315
    %v380 = vpack.c.b16 %v349, %v348
    %v381 = vpack.c.b16 %v351, %v350
    %v382 = vpack.c.b16 %v353, %v352
    %v383 = vpack.c.b16 %v355, %v354
    %v384 = vpack.c.b16 %v357, %v356
    %v385 = vpack.c.b16 %v359, %v358
    %v386 = vpack.c.b16 %v361, %v360
    %v387 = vpack.c.b16 %v363, %v362
    %v388 = vpack.c.b16 %v365, %v364
    %v389 = vpack.c.b16 %v367, %v366
    %v390 = vpack.c.b16 %v369, %v368
    %v391 = vpack.c.b16 %v371, %v370
    %v392 = vpack.c.b16 %v373, %v372
    %v393 = vpack.c.b16 %v375, %v374
    %v394 = vpack.c.b16 %v377, %v376
    %v395 = vpack.c.b16 %v379, %v378
    %412 = vmatprep.subr.bf16.mxu0 0
    %413 = vmatpush1.bf16.msra.mxu0 %v387
    %414 = vmatprep.subr.bf16.mxu0 0
    %415 = vmatpush1.bf16.msra.mxu0 %v386
    %416 = vmatprep.subr.bf16.mxu0 0
    %417 = vmatpush1.bf16.msra.mxu0 %v385
    %418 = vmatprep.subr.bf16.mxu0 0
    %419 = vmatpush1.bf16.msra.mxu0 %v384
    %420 = vmatprep.subr.bf16.mxu0 0
    %421 = vmatpush1.bf16.msra.mxu0 %v383
    %422 = vmatprep.subr.bf16.mxu0 0
    %423 = vmatpush1.bf16.msra.mxu0 %v382
    %424 = vmatprep.subr.bf16.mxu0 0
    %425 = vmatpush1.bf16.msra.mxu0 %v381
    %426 = vmatprep.subr.bf16.mxu0 0
    %427 = vmatpush1.bf16.msra.mxu0 %v380
    %428 = vmatprep.subr.bf16.mxu0 0
    %429 = vmatpush2.bf16.msra.mxu0 %v395
    %430 = vmatprep.subr.bf16.mxu0 0
    %431 = vmatpush2.bf16.msra.mxu0 %v394
    %432 = vmatprep.subr.bf16.mxu0 0
    %433 = vmatpush2.bf16.msra.mxu0 %v393
    %434 = vmatprep.subr.bf16.mxu0 0
    %435 = vmatpush2.bf16.msra.mxu0 %v392
    %436 = vmatprep.subr.bf16.mxu0 0
    %437 = vmatpush2.bf16.msra.mxu0 %v391
    %438 = vmatprep.subr.bf16.mxu0 0
    %439 = vmatpush2.bf16.msra.mxu0 %v390
    %440 = vmatprep.subr.bf16.mxu0 0
    %441 = vmatpush2.bf16.msra.mxu0 %v389
    %442 = vmatprep.subr.bf16.mxu0 0
    %443 = vmatpush2.bf16.msra.mxu0 %v388
    %444 = vmatprep.mubr.bf16.mxu0 %v283
    %445 = vmatmul.mubr.bf16.gmra.mxu0 %v282
    %v446 = vpop.f32.mrf.mxu0
    %v447 = vadd.f32 0.0, %v446
    %v448 = vpop.f32.mrf.mxu0
    %v449 = vpop.f32.mrf.mxu0
    %v450 = vadd.f32 0.0, %v449
    %v451 = vpop.f32.mrf.mxu0
    %452 = vdwg.mxu0
    %v453 = vmul.f32 %v447, 0.0625
    %v454 = vmul.f32 %v450, 0.0625
    %v455 = vmul.f32 %v272, %v272
    %v456 = vmul.f32 %v273, %v273
    %v457 = vsub.f32 %v453, %v455
    %v458 = vsub.f32 %v454, %v456
    %v459 = vmax.f32 %v457, 0.0
    %v460 = vmax.f32 %v458, 0.0
    %v461 = vadd.f32 %v459, 1e-05
    %v462 = vadd.f32 %v460, 1e-05
    %v463 = vrsqrt.pop %v461
    %v464 = vrsqrt.pop %v462
    %v465 = vpack.c.bf16 %v464, %v463
    %v466 = vld [vmem:[%s3] sm:$0xf]
    %v467 = vld [vmem:[%s3 + $0x4] sm:$0xf]
    %v470 = vunpack.c.l.b16 %v466
    %v471 = vunpack.c.l.b16 %v467
    %v472 = vpack.c.b16 %v471, %v470
    %vm474 = vcmask 130048
    %v476 = vsel %vm474, %v465, 0
    %478 = vmatprep.subr.bf16.mxu0 0
    %479 = vmatpush1.bf16.msra.mxu0 0
    %480 = vmatprep.subr.bf16.mxu0 0
    %481 = vmatpush1.bf16.msra.mxu0 0
    %482 = vmatprep.subr.bf16.mxu0 0
    %483 = vmatpush1.bf16.msra.mxu0 0
    %484 = vmatprep.subr.bf16.mxu0 0
    %485 = vmatpush1.bf16.msra.mxu0 0
    %486 = vmatprep.subr.bf16.mxu0 0
    %487 = vmatpush1.bf16.msra.mxu0 0
    %488 = vmatprep.subr.bf16.mxu0 0
    %489 = vmatpush1.bf16.msra.mxu0 0
    %490 = vmatprep.subr.bf16.mxu0 0
    %491 = vmatpush1.bf16.msra.mxu0 0
    %492 = vmatprep.subr.bf16.mxu0 0
    %493 = vmatpush1.bf16.msra.mxu0 %v472
    %494 = vmatprep.subr.bf16.mxu0 0
    %495 = vmatpush2.bf16.msra.mxu0 0
    %496 = vmatprep.subr.bf16.mxu0 0
    %497 = vmatpush2.bf16.msra.mxu0 0
    %498 = vmatprep.subr.bf16.mxu0 0
    %499 = vmatpush2.bf16.msra.mxu0 0
    %500 = vmatprep.subr.bf16.mxu0 0
    %501 = vmatpush2.bf16.msra.mxu0 0
    %502 = vmatprep.subr.bf16.mxu0 0
    %503 = vmatpush2.bf16.msra.mxu0 0
    %504 = vmatprep.subr.bf16.mxu0 0
    %505 = vmatpush2.bf16.msra.mxu0 0
    %506 = vmatprep.subr.bf16.mxu0 0
    %507 = vmatpush2.bf16.msra.mxu0 0
    %508 = vmatprep.subr.bf16.mxu0 0
    %509 = vmatpush2.bf16.msra.mxu0 0
    %510 = vmatprep.mubr.bf16.mxu0 0
    %511 = vmatmul.mubr.bf16.gmra.mxu0 %v476
    %v512 = vpop.f32.mrf.mxu0
    %v513 = vadd.f32 0.0, %v512
    %v514 = vpop.f32.mrf.mxu0
    %v515 = vpop.f32.mrf.mxu0
    %v516 = vadd.f32 0.0, %v515
    %v517 = vpop.f32.mrf.mxu0
    %518 = vdwg.mxu0
    %v519 = vsub.f32 0.0, %v463
    %v520 = vsub.f32 0.0, %v464
    %v521 = vmul.f32 %v519, %v272
    %v522 = vmul.f32 %v520, %v273
    %v523 = vpack.c.bf16 %v522, %v521
    %v524 = vld [vmem:[%s4] sm:$0xf]
    %v525 = vld [vmem:[%s4 + $0x4] sm:$0xf]
    %v528 = vunpack.c.l.b16 %v524
    %v529 = vunpack.c.l.b16 %v525
    %v530 = vpack.c.b16 %v529, %v528
    %v533 = vsel %vm474, %v523, 0
    %535 = vmatprep.subr.bf16.mxu0 0
    %536 = vmatpush1.bf16.msra.mxu0 0
    %537 = vmatprep.subr.bf16.mxu0 0
    %538 = vmatpush1.bf16.msra.mxu0 0
    %539 = vmatprep.subr.bf16.mxu0 0
    %540 = vmatpush1.bf16.msra.mxu0 0
    %541 = vmatprep.subr.bf16.mxu0 0
    %542 = vmatpush1.bf16.msra.mxu0 0
    %543 = vmatprep.subr.bf16.mxu0 0
    %544 = vmatpush1.bf16.msra.mxu0 0
    %545 = vmatprep.subr.bf16.mxu0 0
    %546 = vmatpush1.bf16.msra.mxu0 0
    %547 = vmatprep.subr.bf16.mxu0 0
    %548 = vmatpush1.bf16.msra.mxu0 0
    %549 = vmatprep.subr.bf16.mxu0 0
    %550 = vmatpush1.bf16.msra.mxu0 %v530
    %551 = vmatprep.subr.bf16.mxu0 0
    %552 = vmatpush2.bf16.msra.mxu0 0
    %553 = vmatprep.subr.bf16.mxu0 0
    %554 = vmatpush2.bf16.msra.mxu0 0
    %555 = vmatprep.subr.bf16.mxu0 0
    %556 = vmatpush2.bf16.msra.mxu0 0
    %557 = vmatprep.subr.bf16.mxu0 0
    %558 = vmatpush2.bf16.msra.mxu0 0
    %559 = vmatprep.subr.bf16.mxu0 0
    %560 = vmatpush2.bf16.msra.mxu0 0
    %561 = vmatprep.subr.bf16.mxu0 0
    %562 = vmatpush2.bf16.msra.mxu0 0
    %563 = vmatprep.subr.bf16.mxu0 0
    %564 = vmatpush2.bf16.msra.mxu0 0
    %565 = vmatprep.subr.bf16.mxu0 0
    %566 = vmatpush2.bf16.msra.mxu0 0
    %567 = vmatprep.mubr.bf16.mxu0 0
    %568 = vmatmul.mubr.bf16.gmra.mxu0 %v533
    %v569 = vpop.f32.mrf.mxu0
    %v570 = vadd.f32 0.0, %v569
    %v571 = vpop.f32.mrf.mxu0
    %v572 = vpop.f32.mrf.mxu0
    %v573 = vadd.f32 0.0, %v572
    %v574 = vpop.f32.mrf.mxu0
    %575 = vdwg.mxu0
    %v576 = vmul.f32 %v513, %v264
    %v577 = vmul.f32 %v516, %v268
    %v578 = vadd.f32 %v576, %v570
    %v579 = vadd.f32 %v577, %v573
    %v580 = vld [vmem:[%s5] sm:$0x1]
    %v582 = vlaneseq
    %v583 = vshrl.u32 %v582, 7
    %v584 = vsub.s32 0, %v583
    %v585 = vrot.slane %v580, %v584
    %v587 = vadd.f32 %v578, %v585
    %v588 = vadd.f32 %v579, %v585
    %589 = vst [vmem:[#allocation2] sm:$0xff] %v587
    %590 = vst [vmem:[#allocation2 + $0x8] sm:$0xff] %v588
    // Predicated region
    $region26: #{tpu_custom_call.1} parent=1 // pred_check
      _
    $region27: #{tpu_custom_call.1} parent=1 // pred_check_branch
      %592 = sbr.rel (0) target = $region29
    $region28: #{tpu_custom_call.1} parent=1 // pred_region
      %s594 = ssub.s32 256, 256
      %595 = vsyncadd [#allocation3], %s594
      %s596 = sshll.u32 [#allocation2], 4
      %s597 = int_to_ptr.vmem [resolvable:$true] %s596
      %602 = dma.vmem_to_hbm [thread:$0]  %s597, 256, %s6, [#allocation3], 128, 128, 8
    $region29: #{tpu_custom_call.1} parent=1 // pred_fallthru
      _
    // Predicated region
    $region30: #{tpu_custom_call.1} parent=1 // pred_check
      _
    $region31: #{tpu_custom_call.1} parent=1 // pred_check_branch
      %604 = sbr.rel (0) target = $region33
    $region32: #{tpu_custom_call.1} parent=1 // pred_region
      %605 = dma.done [#allocation3], 256
    $region33: #{tpu_custom_call.1} parent=1 // pred_fallthru
      _
    %606 = vsyncpa [#allocation3], 1

</llo_original>
